<compile_context>
chip_gen: v7x
topology: tpu7x:2x2x1
jax: 0.10.0
libtpu: 0.0.40
codegen_flags: <defaults>
</compile_context>

<pallas_src>
import jax
import jax.numpy as jnp
from jax.experimental import pallas as pl
from jax.experimental.pallas import tpu as pltpu

# ---------------- problem sizes (consistent with the module) -----------------
OBS_DIM = 16
ACT_DIM = 4
HID = 32                      # hidden_sizes_actor == hidden_sizes_critic == (32, 32)
BATCH = 16
TB = 8                        # batch tile (one grid step)
OUT_DIM = 2 * ACT_DIM         # actor output width
Q_COL = OUT_DIM               # column of the merged output slab holding q
SLAB_W = 128                  # lane-dense output / output-layer slab width

# merged-output layout invariants (guard against silent corruption on resize)
assert Q_COL == OUT_DIM, "q column must not overlap actor output columns"
assert Q_COL < SLAB_W

# slab32 row offsets (width = HID = 32): hidden-layer weights + biases
R_A_W1 = 0      # [16, 32]  actor layer 1
R_A_W2 = 16     # [32, 32]  actor layer 2
R_C_W1 = 48     # [48, 32]  critic layer 1: rows 48:64 multiply obs (c_w1_obs),
                #           rows 64:96 multiply h (W_fused) -> single K=48 dot
R_C_W2 = 96     # [32, 32]  critic layer 2
R_A_B1 = 128    # [1, 32]
R_A_B2 = 136    # [1, 32]
R_C_B1F = 144   # [1, 32]   c_b1 + a_bo[:, :ACT_DIM] @ c_w1_act
R_C_B2 = 152    # [1, 32]
W32_ROWS = 160

# slab128 row offsets (width = 128): fused output layer
R_OUT_W = 0     # [64, 128] rows 0:32 = a_wo (cols 0:OUT_DIM), rows 32:64 = c_wo (col Q_COL)
R_OUT_B = 64    # [1, 128]  a_bo in cols 0:OUT_DIM, c_bo at col Q_COL
W128_ROWS = 72


# ---------------- parameter init (deterministic, orthogonal like PyTorch) ----
def _orthogonal(key, in_dim, out_dim, gain):
    # nn.init.orthogonal_ on a (out, in) weight; we store the transpose (in, out).
    w = jax.nn.initializers.orthogonal(scale=gain)(key, (out_dim, in_dim), jnp.float32)
    return jnp.transpose(w)  # [in, out]


def make_params(seed=0):
    keys = jax.random.split(jax.random.PRNGKey(seed), 8)
    p = {}
    # actor: obs_dim -> 32 -> 32 -> 2*act_dim
    p["a_w1"] = _orthogonal(keys[0], OBS_DIM, HID, 1.0)
    p["a_b1"] = jnp.zeros((1, HID), jnp.float32)
    p["a_w2"] = _orthogonal(keys[1], HID, HID, 1.0)
    p["a_b2"] = jnp.zeros((1, HID), jnp.float32)
    p["a_wo"] = _orthogonal(keys[2], HID, OUT_DIM, 0.01)
    p["a_bo"] = jnp.zeros((1, OUT_DIM), jnp.float32)
    # critic_1: (obs_dim + act_dim) -> 32 -> 32 -> 1
    c_w1 = _orthogonal(keys[3], OBS_DIM + ACT_DIM, HID, 1.0)
    p["c_w1_obs"] = c_w1[:OBS_DIM, :]   # rows that multiply obs
    p["c_w1_act"] = c_w1[OBS_DIM:, :]   # rows that multiply act
    p["c_b1"] = jnp.zeros((1, HID), jnp.float32)
    p["c_w2"] = _orthogonal(keys[4], HID, HID, 1.0)
    p["c_b2"] = jnp.zeros((1, HID), jnp.float32)
    p["c_wo"] = _orthogonal(keys[5], HID, 1, 1.0)
    p["c_bo"] = jnp.zeros((1, 1), jnp.float32)
    return p


def pack_params(p):
    """Pack all weights/biases into two pre-padded f32 slabs (one-time, host side)."""
    # Exact algebraic fold of the actor->critic dependency (see NOTE at top):
    #   act = h2 @ a_wo[:, :ACT_DIM] + a_bo[:, :ACT_DIM]
    w_fused = p["a_wo"][:, :ACT_DIM] @ p["c_w1_act"]                 # [32, 32]
    c_b1f = p["c_b1"] + p["a_bo"][:, :ACT_DIM] @ p["c_w1_act"]       # [1, 32]

    w32 = jnp.zeros((W32_ROWS, HID), jnp.float32)
    w32 = w32.at[R_A_W1:R_A_W1 + OBS_DIM].set(p["a_w1"])
    w32 = w32.at[R_A_W2:R_A_W2 + HID].set(p["a_w2"])
    # critic layer 1 stacked for a single K=48 dot against concat([obs, h])
    w32 = w32.at[R_C_W1:R_C_W1 + OBS_DIM].set(p["c_w1_obs"])
    w32 = w32.at[R_C_W1 + OBS_DIM:R_C_W1 + OBS_DIM + HID].set(w_fused)
    w32 = w32.at[R_C_W2:R_C_W2 + HID].set(p["c_w2"])
    w32 = w32.at[R_A_B1].set(p["a_b1"][0])
    w32 = w32.at[R_A_B2].set(p["a_b2"][0])
    w32 = w32.at[R_C_B1F].set(c_b1f[0])
    w32 = w32.at[R_C_B2].set(p["c_b2"][0])

    # fused output layer: rows 0:32 = a_wo (cols 0:OUT_DIM), rows 32:64 = c_wo (col Q_COL),
    # row R_OUT_B = combined bias (a_bo cols 0:OUT_DIM, c_bo at Q_COL; no overlap).
    w128 = jnp.zeros((W128_ROWS, SLAB_W), jnp.float32)
    w128 = w128.at[R_OUT_W:R_OUT_W + HID, 0:OUT_DIM].set(p["a_wo"])
    w128 = w128.at[R_OUT_W + HID:R_OUT_W + 2 * HID, Q_COL].set(p["c_wo"][:, 0])
    w128 = w128.at[R_OUT_B, 0:OUT_DIM].set(p["a_bo"][0])
    w128 = w128.at[R_OUT_B, Q_COL].set(p["c_bo"][0, 0])
    return w32, w128


# ---------------- fused Pallas kernel ----------------------------------------
def _ac_kernel(obs_ref, w32_ref, w128_ref, out_ref):
    obs = obs_ref[...]                                     # [TB, OBS_DIM]

    def w32(r, n):
        return w32_ref[pl.ds(r, n), :]                     # [n, 32]

    # ---- actor hidden layers (ReLU) ----
    h = jnp.dot(obs, w32(R_A_W1, OBS_DIM), preferred_element_type=jnp.float32)
    h = jnp.maximum(h + w32(R_A_B1, 1), 0.0)
    h = jnp.dot(h, w32(R_A_W2, HID), preferred_element_type=jnp.float32)
    h = jnp.maximum(h + w32(R_A_B2, 1), 0.0)               # [TB, 32]

    # ---- critic_1 layer 1: single K=48 dot over [obs | h] (fused split matmul) ----
    g = jnp.dot(jnp.concatenate([obs, h], axis=-1),
                w32(R_C_W1, OBS_DIM + HID),
                preferred_element_type=jnp.float32)
    g = jnp.maximum(g + w32(R_C_B1F, 1), 0.0)
    g = jnp.dot(g, w32(R_C_W2, HID), preferred_element_type=jnp.float32)
    g = jnp.maximum(g + w32(R_C_B2, 1), 0.0)               # [TB, 32]

    # ---- fused output layer: one MXU push for actor out (cols 0:OUT_DIM) + q (col Q_COL)
    hg = jnp.concatenate([h, g], axis=-1)                  # [TB, 64]
    out_ref[...] = (
        jnp.dot(hg, w128_ref[pl.ds(R_OUT_W, 2 * HID), :],
                preferred_element_type=jnp.float32)
        + w128_ref[pl.ds(R_OUT_B, 1), :]
    )                                                       # lane-dense [TB, 128] store


def mlp_actor_critic_forward(obs, packed, *, tb=TB):
    """Returns (out, q_val) exactly like MLPActorCritic.forward."""
    w32, w128 = packed
    B = obs.shape[0]
    pad = (-B) % tb
    if pad:
        obs = jnp.pad(obs, ((0, pad), (0, 0)))
    Bp = obs.shape[0]

    slab = pl.pallas_call(
        _ac_kernel,
        out_shape=jax.ShapeDtypeStruct((Bp, SLAB_W), jnp.float32),
        grid_spec=pltpu.PrefetchScalarGridSpec(
            num_scalar_prefetch=0,
            grid=(Bp // tb,),
            in_specs=[
                pl.BlockSpec((tb, OBS_DIM), lambda i: (i, 0)),          # streams per tile
                pl.BlockSpec((W32_ROWS, HID), lambda i: (0, 0)),        # VMEM-resident
                pl.BlockSpec((W128_ROWS, SLAB_W), lambda i: (0, 0)),    # VMEM-resident
            ],
            out_specs=pl.BlockSpec((tb, SLAB_W), lambda i: (i, 0)),
        ),
        compiler_params=pltpu.CompilerParams(
            dimension_semantics=("parallel",)),     # v7x: shard batch tiles over 2 TCs
    )(obs, w32, w128)

    slab = slab[:B]
    out = slab[:, :OUT_DIM]
    q_val = slab[:, Q_COL:Q_COL + 1]
    return out, q_val


# ---------------- pure-JAX reference for a sanity check ----------------------
def _reference(obs, p):
    relu = lambda x: jnp.maximum(x, 0.0)
    h = relu(obs @ p["a_w1"] + p["a_b1"])
    h = relu(h @ p["a_w2"] + p["a_b2"])
    out = h @ p["a_wo"] + p["a_bo"]
    act = out[:, :ACT_DIM]
    x = jnp.concatenate([obs, act], axis=-1)
    c_w1 = jnp.concatenate([p["c_w1_obs"], p["c_w1_act"]], axis=0)
    g = relu(x @ c_w1 + p["c_b1"])
    g = relu(g @ p["c_w2"] + p["c_b2"])
    q = g @ p["c_wo"] + p["c_bo"]
    return out, q


if __name__ == "__main__":
    key = jax.random.PRNGKey(0)
    obs = jax.random.normal(key, (BATCH, OBS_DIM), jnp.float32)
    params = make_params(seed=0)
    packed = jax.block_until_ready(pack_params(params))   # one-time host-side packing

    out, q_val = mlp_actor_critic_forward(obs, packed)
    jax.block_until_ready((out, q_val))

    ref_out, ref_q = _reference(obs, params)
    assert out.shape == (BATCH, OUT_DIM) and q_val.shape == (BATCH, 1)
    assert jnp.allclose(out, ref_out, atol=1e-5, rtol=1e-4)
    assert jnp.allclose(q_val, ref_q, atol=1e-5, rtol=1e-4)

    print("KERNEL_OK")
</pallas_src>

<mosaic_0001>
module attributes {stable_mosaic.version = 11 : i64} {
  func.func @_ac_kernel(%arg0: i32, %arg1: memref<8x16xf32, #tpu.memory_space<vmem>>, %arg2: memref<160x32xf32, #tpu.memory_space<vmem>>, %arg3: memref<72x128xf32, #tpu.memory_space<vmem>>, %arg4: memref<8x128xf32, #tpu.memory_space<vmem>>) attributes {dimension_semantics = [#tpu.dimension_semantics<parallel>], iteration_bounds = array<i64: 2>, scalar_prefetch = 0 : i64, scratch_operands = 0 : i64, tpu.core_type = #tpu.core_type<tc>, window_params = [{transform_indices = @transform_0, window_bounds = array<i64: 8, 16>}, {pipeline_mode = #tpu.pipeline_mode<synchronous>, transform_indices = @transform_1, window_bounds = array<i64: 160, 32>}, {pipeline_mode = #tpu.pipeline_mode<synchronous>, transform_indices = @transform_2, window_bounds = array<i64: 72, 128>}, {transform_indices = @transform_3, window_bounds = array<i64: 8, 128>}]} {
    %c0 = arith.constant 0 : index
    %c0_0 = arith.constant 0 : index
    %0 = vector.load %arg1[%c0, %c0_0] : memref<8x16xf32, #tpu.memory_space<vmem>>, vector<8x16xf32>
    %c0_1 = arith.constant 0 : index
    %c0_2 = arith.constant 0 : index
    %1 = vector.load %arg2[%c0_1, %c0_2] : memref<160x32xf32, #tpu.memory_space<vmem>>, vector<16x32xf32>
    %cst = arith.constant dense<0.000000e+00> : vector<8x32xf32>
    %2 = tpu.matmul %0, %1, %cst {dimension_numbers = #tpu.dot_dimension_numbers<[1], [0], [0], [1], [0, 0, 1, 1], [], []>} : vector<8x16xf32>, vector<16x32xf32>, vector<8x32xf32> -> vector<8x32xf32>
    %c128 = arith.constant 128 : index
    %c0_3 = arith.constant 0 : index
    %3 = vector.load %arg2[%c128, %c0_3] : memref<160x32xf32, #tpu.memory_space<vmem>>, vector<1x32xf32>
    %4 = vector.broadcast %3 : vector<1x32xf32> to vector<8x32xf32>
    %5 = arith.addf %2, %4 : vector<8x32xf32>
    %cst_4 = arith.constant 0.000000e+00 : f32
    %6 = vector.broadcast %cst_4 : f32 to vector<8x32xf32>
    %7 = arith.maximumf %5, %6 : vector<8x32xf32>
    %c16 = arith.constant 16 : index
    %c0_5 = arith.constant 0 : index
    %8 = vector.load %arg2[%c16, %c0_5] : memref<160x32xf32, #tpu.memory_space<vmem>>, vector<32x32xf32>
    %cst_6 = arith.constant dense<0.000000e+00> : vector<8x32xf32>
    %9 = tpu.matmul %7, %8, %cst_6 {dimension_numbers = #tpu.dot_dimension_numbers<[1], [0], [0], [1], [0, 0, 1, 1], [], []>} : vector<8x32xf32>, vector<32x32xf32>, vector<8x32xf32> -> vector<8x32xf32>
    %c136 = arith.constant 136 : index
    %c0_7 = arith.constant 0 : index
    %10 = vector.load %arg2[%c136, %c0_7] : memref<160x32xf32, #tpu.memory_space<vmem>>, vector<1x32xf32>
    %11 = vector.broadcast %10 : vector<1x32xf32> to vector<8x32xf32>
    %12 = arith.addf %9, %11 : vector<8x32xf32>
    %cst_8 = arith.constant 0.000000e+00 : f32
    %13 = vector.broadcast %cst_8 : f32 to vector<8x32xf32>
    %14 = arith.maximumf %12, %13 : vector<8x32xf32>
    %15 = tpu.concatenate %0, %14 in 1 : vector<8x16xf32>, vector<8x32xf32> -> vector<8x48xf32>
    %c48 = arith.constant 48 : index
    %c0_9 = arith.constant 0 : index
    %16 = vector.load %arg2[%c48, %c0_9] : memref<160x32xf32, #tpu.memory_space<vmem>>, vector<48x32xf32>
    %cst_10 = arith.constant dense<0.000000e+00> : vector<8x32xf32>
    %17 = tpu.matmul %15, %16, %cst_10 {dimension_numbers = #tpu.dot_dimension_numbers<[1], [0], [0], [1], [0, 0, 1, 1], [], []>} : vector<8x48xf32>, vector<48x32xf32>, vector<8x32xf32> -> vector<8x32xf32>
    %c144 = arith.constant 144 : index
    %c0_11 = arith.constant 0 : index
    %18 = vector.load %arg2[%c144, %c0_11] : memref<160x32xf32, #tpu.memory_space<vmem>>, vector<1x32xf32>
    %19 = vector.broadcast %18 : vector<1x32xf32> to vector<8x32xf32>
    %20 = arith.addf %17, %19 : vector<8x32xf32>
    %cst_12 = arith.constant 0.000000e+00 : f32
    %21 = vector.broadcast %cst_12 : f32 to vector<8x32xf32>
    %22 = arith.maximumf %20, %21 : vector<8x32xf32>
    %c96 = arith.constant 96 : index
    %c0_13 = arith.constant 0 : index
    %23 = vector.load %arg2[%c96, %c0_13] : memref<160x32xf32, #tpu.memory_space<vmem>>, vector<32x32xf32>
    %cst_14 = arith.constant dense<0.000000e+00> : vector<8x32xf32>
    %24 = tpu.matmul %22, %23, %cst_14 {dimension_numbers = #tpu.dot_dimension_numbers<[1], [0], [0], [1], [0, 0, 1, 1], [], []>} : vector<8x32xf32>, vector<32x32xf32>, vector<8x32xf32> -> vector<8x32xf32>
    %c152 = arith.constant 152 : index
    %c0_15 = arith.constant 0 : index
    %25 = vector.load %arg2[%c152, %c0_15] : memref<160x32xf32, #tpu.memory_space<vmem>>, vector<1x32xf32>
    %26 = vector.broadcast %25 : vector<1x32xf32> to vector<8x32xf32>
    %27 = arith.addf %24, %26 : vector<8x32xf32>
    %cst_16 = arith.constant 0.000000e+00 : f32
    %28 = vector.broadcast %cst_16 : f32 to vector<8x32xf32>
    %29 = arith.maximumf %27, %28 : vector<8x32xf32>
    %30 = tpu.concatenate %14, %29 in 1 : vector<8x32xf32>, vector<8x32xf32> -> vector<8x64xf32>
    %c0_17 = arith.constant 0 : index
    %c0_18 = arith.constant 0 : index
    %31 = vector.load %arg3[%c0_17, %c0_18] : memref<72x128xf32, #tpu.memory_space<vmem>>, vector<64x128xf32>
    %cst_19 = arith.constant dense<0.000000e+00> : vector<8x128xf32>
    %32 = tpu.matmul %30, %31, %cst_19 {dimension_numbers = #tpu.dot_dimension_numbers<[1], [0], [0], [1], [0, 0, 1, 1], [], []>} : vector<8x64xf32>, vector<64x128xf32>, vector<8x128xf32> -> vector<8x128xf32>
    %c64 = arith.constant 64 : index
    %c0_20 = arith.constant 0 : index
    %33 = vector.load %arg3[%c64, %c0_20] : memref<72x128xf32, #tpu.memory_space<vmem>>, vector<1x128xf32>
    %34 = vector.broadcast %33 : vector<1x128xf32> to vector<8x128xf32>
    %35 = arith.addf %32, %34 : vector<8x128xf32>
    %c0_21 = arith.constant 0 : index
    %c0_22 = arith.constant 0 : index
    %36 = vector.load %arg4[%c0_21, %c0_22] : memref<8x128xf32, #tpu.memory_space<vmem>>, vector<8x128xf32>
    tpu.vector_store %arg4[%c0_21, %c0_22], %35 {strides = array<i32>} : memref<8x128xf32, #tpu.memory_space<vmem>>, vector<8x128xf32>,
    return
  }
  func.func @transform_0(%arg0: i32) -> (i32, i32) {
    %c0_i32 = arith.constant 0 : i32
    %c0_i32_0 = arith.constant 0 : i32
    return %arg0, %c0_i32 : i32, i32
  }
  func.func @transform_1(%arg0: i32) -> (i32, i32) {
    %c0_i32 = arith.constant 0 : i32
    %c0_i32_0 = arith.constant 0 : i32
    %c0_i32_1 = arith.constant 0 : i32
    return %c0_i32, %c0_i32_0 : i32, i32
  }
  func.func @transform_2(%arg0: i32) -> (i32, i32) {
    %c0_i32 = arith.constant 0 : i32
    %c0_i32_0 = arith.constant 0 : i32
    %c0_i32_1 = arith.constant 0 : i32
    return %c0_i32, %c0_i32_0 : i32, i32
  }
  func.func @transform_3(%arg0: i32) -> (i32, i32) {
    %c0_i32 = arith.constant 0 : i32
    %c0_i32_0 = arith.constant 0 : i32
    return %arg0, %c0_i32 : i32, i32
  }
}

</mosaic_0001>

<llo_original>
// kernel: tpu_custom_call.1
$region0: #{tpu_custom_call.1}
  #allocation0 [shape = 'u32[]', space=smem, size = 0x4, offset = 0x4, fixed_abs, tag = 'smem constant byte address 0x4 - core index']
  #allocation1 [shape = 'u32[144,128]{1,0:T(1,128)}', space=vmem, size = 0x12000, scoped, tag = 'internal scratch']
  %s0 = inlined_call_operand.vmem [shape: f32[16,16], index: 0, kind: input, shape index: {}]
  %s1 = inlined_call_operand.vmem [shape: f32[160,32], index: 1, kind: input, shape index: {}]
  %s2 = inlined_call_operand.vmem [shape: f32[72,128], index: 2, kind: input, shape index: {}]
  %s3 = inlined_call_operand.hbm [shape: f32[16,128], index: 3, kind: output, shape index: {}]
  %s4 = sld [smem:[#allocation0]]
  $region45: #{tpu_custom_call.1} parent=0
    _
  %s6 = ssub.s32 1, %s4
  %s7 = scalar_select 0, %s6, %s4
  $region1: #{tpu_custom_call.1} parent=0
    #allocation2 [shape = 'u8[8192]{0}', space=vmem, size = 0x2000, scoped, tag = 'output window, operand 0']
    #allocation3 [shape = 's32[2]{0}', space=sflag, size = 0x8, scoped, tag = 'scoped memory for tpu_custom_call.1']
    %8 = vsyncpa [#allocation3], 0
    %s9 = scalar_lea.sflag [#allocation3], 1
    %10 = vsyncpa %s9, 0
    loop: start=0, step=1, limit=4
    $region2: #{tpu_custom_call.1} parent=1 // loop_pre_header
      _
    $region3: #{tpu_custom_call.1} parent=1 // loop_header
      %s12 = sphi 0, %s16
      %p13 = scmp.ge.s32.totalorder %s12, 4
      %s22 = sphi 0, %s24
      %s25 = sphi 0, %s22
      %s26 = sphi 0, %s25
      %s42 = sphi 0, %s26
      %s46 = sphi 0, %s46
      %s48 = sphi 0, %s46
      %s49 = sphi 0, %s48
      %s63 = sphi 0, %s49
      %s67 = sphi 0, %s67
      %s69 = sphi 0, %s67
      %s70 = sphi 0, %s69
      %s84 = sphi 0, %s70
      %s90 = sphi 0, %s92
      %s93 = sphi 0, %s90
      %s94 = sphi 0, %s93
      %s110 = sphi 0, %s94
    $region4: #{tpu_custom_call.1} parent=1 // loop_header_branch
      %15 = sbr.rel (%p13) target = $region8
    $region5: #{tpu_custom_call.1} parent=1 // loop_body
      %s17 = ssub.s32 %s12, 1
      %s18 = ssub.s32 %s12, 2
      %s19 = sadd.s32 %s12, 1
      %s20 = ssub.s32 %s12, %s19
      %p21 = scmp.eq.s32.totalorder %s20, 0
      %s23 = sadd.s32 %s22, 1
      %s24 = scalar_select %p21, %s22, %s23
      %p27 = pneg %p21
      %p28 = scmp.eq.s32.totalorder %s12, 1
      %p29 = por %p27, %p28
      %p30 = scmp.ne.s32.totalorder %s22, %s25
      %p31 = scmp.eq.s32.totalorder %s12, 0
      %p32 = por %p30, %p31
      %p33 = scmp.ne.s32.totalorder %s22, %s25
      %p34 = scmp.eq.s32.totalorder %s17, 1
      %p35 = por %p33, %p34
      %p36 = scmp.ne.s32.totalorder %s25, %s26
      %p37 = scmp.eq.s32.totalorder %s17, 0
      %p38 = por %p36, %p37
      %p39 = scmp.ne.s32.totalorder %s25, %s26
      %p40 = scmp.eq.s32.totalorder %s18, 1
      %p41 = por %p39, %p40
      %p43 = scmp.ne.s32.totalorder %s26, %s42
      %p44 = scmp.eq.s32.totalorder %s18, 0
      %p45 = por %p43, %p44
      %s47 = sadd.s32 %s46, 1
      %p50 = scmp.eq.s32.totalorder %s12, 1
      %p51 = scmp.ne.s32.totalorder %s46, %s48
      %p52 = scmp.eq.s32.totalorder %s12, 0
      %p53 = por %p51, %p52
      %p54 = scmp.ne.s32.totalorder %s46, %s48
      %p55 = scmp.eq.s32.totalorder %s17, 1
      %p56 = por %p54, %p55
      %p57 = scmp.ne.s32.totalorder %s48, %s49
      %p58 = scmp.eq.s32.totalorder %s17, 0
      %p59 = por %p57, %p58
      %p60 = scmp.ne.s32.totalorder %s48, %s49
      %p61 = scmp.eq.s32.totalorder %s18, 1
      %p62 = por %p60, %p61
      %p64 = scmp.ne.s32.totalorder %s49, %s63
      %p65 = scmp.eq.s32.totalorder %s18, 0
      %p66 = por %p64, %p65
      %s68 = sadd.s32 %s67, 1
      %p71 = scmp.eq.s32.totalorder %s12, 1
      %p72 = scmp.ne.s32.totalorder %s67, %s69
      %p73 = scmp.eq.s32.totalorder %s12, 0
      %p74 = por %p72, %p73
      %p75 = scmp.ne.s32.totalorder %s67, %s69
      %p76 = scmp.eq.s32.totalorder %s17, 1
      %p77 = por %p75, %p76
      %p78 = scmp.ne.s32.totalorder %s69, %s70
      %p79 = scmp.eq.s32.totalorder %s17, 0
      %p80 = por %p78, %p79
      %p81 = scmp.ne.s32.totalorder %s69, %s70
      %p82 = scmp.eq.s32.totalorder %s18, 1
      %p83 = por %p81, %p82
      %p85 = scmp.ne.s32.totalorder %s70, %s84
      %p86 = scmp.eq.s32.totalorder %s18, 0
      %p87 = por %p85, %p86
      %s88 = ssub.s32 %s12, %s19
      %p89 = scmp.eq.s32.totalorder %s88, 0
      %s91 = sadd.s32 %s90, 1
      %s92 = scalar_select %p89, %s90, %s91
      %p95 = pneg %p89
      %p96 = scmp.eq.s32.totalorder %s12, 1
      %p97 = por %p95, %p96
      %p98 = scmp.ne.s32.totalorder %s90, %s93
      %p99 = scmp.eq.s32.totalorder %s12, 0
      %p100 = por %p98, %p99
      %p101 = scmp.ne.s32.totalorder %s90, %s93
      %p102 = scmp.eq.s32.totalorder %s17, 1
      %p103 = por %p101, %p102
      %p104 = scmp.ne.s32.totalorder %s93, %s94
      %p105 = scmp.eq.s32.totalorder %s17, 0
      %p106 = por %p104, %p105
      %p107 = scmp.ne.s32.totalorder %s93, %s94
      %p108 = scmp.eq.s32.totalorder %s18, 1
      %p109 = por %p107, %p108
      %p111 = scmp.ne.s32.totalorder %s94, %s110
      %p112 = scmp.eq.s32.totalorder %s18, 0
      %p113 = por %p111, %p112
      %p114 = scmp.le.s32.totalorder 1, %s12
      %p115 = scmp.lt.s32.totalorder %s12, 3
      %p116 = pnand %p114, %p115
      %p117 = pneg %p116
      // Predicated region
      $region9: #{tpu_custom_call.1} parent=5 // pred_check
        _
      $region10: #{tpu_custom_call.1} parent=5 // pred_check_branch
        %119 = sbr.rel (%p116) target = $region12
      $region11: #{tpu_custom_call.1} parent=5 // pred_region
        %s120 = ssub.s32 %s12, 1
        // Predicated region
        $region13: #{tpu_custom_call.1} parent=11 // pred_check
          %p121 = pneg %p59
        $region14: #{tpu_custom_call.1} parent=11 // pred_check_branch
          %123 = sbr.rel (%p121) target = $region16
        $region15: #{tpu_custom_call.1} parent=11 // pred_region
          _
        $region16: #{tpu_custom_call.1} parent=11 // pred_fallthru
          _
        // Predicated region
        $region17: #{tpu_custom_call.1} parent=11 // pred_check
          %p124 = pneg %p80
        $region18: #{tpu_custom_call.1} parent=11 // pred_check_branch
          %126 = sbr.rel (%p124) target = $region20
        $region19: #{tpu_custom_call.1} parent=11 // pred_region
          _
        $region20: #{tpu_custom_call.1} parent=11 // pred_fallthru
          _
      $region12: #{tpu_custom_call.1} parent=5 // pred_fallthru
        _
      %p127 = scmp.lt.s32.totalorder %s12, 2
      // Predicated region
      $region21: #{tpu_custom_call.1} parent=5 // pred_check
        %p128 = pneg %p127
      $region22: #{tpu_custom_call.1} parent=5 // pred_check_branch
        %130 = sbr.rel (%p128) target = $region24
      $region23: #{tpu_custom_call.1} parent=5 // pred_region
        // Predicated region
        $region25: #{tpu_custom_call.1} parent=23 // pred_check
          %p131 = pneg %p32
        $region26: #{tpu_custom_call.1} parent=23 // pred_check_branch
          %133 = sbr.rel (%p131) target = $region28
        $region27: #{tpu_custom_call.1} parent=23 // pred_region
          %p134 = scmp.lt.s32.totalorder %s12, 1
          %s135 = scalar_select %p134, %s12, 1
          %s136 = smul.addr %s135, 8
          %s137 = scalar_lea.vmem %s0, %s136
        $region28: #{tpu_custom_call.1} parent=23 // pred_fallthru
          _
      $region24: #{tpu_custom_call.1} parent=5 // pred_fallthru
        _
      %p138 = scmp.le.s32.totalorder 1, %s12
      %p139 = scmp.lt.s32.totalorder %s12, 3
      %p140 = pnand %p138, %p139
      %p141 = pneg %p140
      // Predicated region
      $region29: #{tpu_custom_call.1} parent=5 // pred_check
        _
      $region30: #{tpu_custom_call.1} parent=5 // pred_check_branch
        %143 = sbr.rel (%p140) target = $region32
      $region31: #{tpu_custom_call.1} parent=5 // pred_region
        %s144 = ssub.s32 %s12, 1
        %p145 = scmp.lt.s32.totalorder %s17, 1
        %s146 = scalar_select %p145, %s17, 1
        %s147 = smul.addr %s146, 8
        %s148 = scalar_lea.vmem %s0, %s147
        %p149 = pneg %p38
        %p150 = pneg %p35
        %p151 = pneg %p59
        %p152 = pneg %p56
        %p153 = pneg %p80
        %p154 = pneg %p77
        %p155 = pneg %p106
        %p156 = pneg %p103
        %s157 = sand.u32 %s93, 1
        %s158 = scalar_lea.sflag [#allocation3], %s157
        %s159 = sand.u32 %s93, 1
        %s160 = smul.addr %s159, 8
        %s161 = scalar_lea.vmem [#allocation2], %s160
        %p162 = scmp.lt.s32.totalorder %s17, 1
        %s163 = scalar_select %p162, %s17, 1
        %s164 = smul.addr %s163, 8
        %s165 = scalar_lea.vmem %s0, %s164
        %v166 = vld [vmem:[%s165] sm:$0xff]
        %v167 = vld [vmem:[%s1] sm:$0xff]
        %v168 = vld [vmem:[%s1 + $0x8] sm:$0xff]
        %v169 = vld [vmem:[%s1 + $0x80] sm:$0x1]
        %v170 = vlaneseq
        %v171 = vshrl.u32 %v170, 7
        %v172 = vsub.s32 0, %v171
        %v173 = vrot.slane %v169, %v172
        %vm174 = vcmask 130048
        %v176 = vsel %vm174, %v166, 0
        %178 = vmatprep.subr.mxu0 0.0
        %179 = vmatpush1.msra.mxu0 %v167
        %180 = vmatprep.subr.mxu0 0.0
        %181 = vmatpush1.msra.mxu0 %v168
        %182 = vmatprep.subr.mxu0 0.0
        %183 = vmatpush1.msra.mxu0 0.0
        %184 = vmatprep.subr.mxu0 0.0
        %185 = vmatpush1.msra.mxu0 0.0
        %186 = vmatprep.subr.mxu0 0.0
        %187 = vmatpush1.msra.mxu0 0.0
        %188 = vmatprep.subr.mxu0 0.0
        %189 = vmatpush1.msra.mxu0 0.0
        %190 = vmatprep.subr.mxu0 0.0
        %191 = vmatpush1.msra.mxu0 0.0
        %192 = vmatprep.subr.mxu0 0.0
        %193 = vmatpush1.msra.mxu0 0.0
        %194 = vmatprep.subr.mxu0 0.0
        %195 = vmatpush1.msra.mxu0 0.0
        %196 = vmatprep.subr.mxu0 0.0
        %197 = vmatpush1.msra.mxu0 0.0
        %198 = vmatprep.subr.mxu0 0.0
        %199 = vmatpush1.msra.mxu0 0.0
        %200 = vmatprep.subr.mxu0 0.0
        %201 = vmatpush1.msra.mxu0 0.0
        %202 = vmatprep.subr.mxu0 0.0
        %203 = vmatpush1.msra.mxu0 0.0
        %204 = vmatprep.subr.mxu0 0.0
        %205 = vmatpush1.msra.mxu0 0.0
        %206 = vmatprep.subr.mxu0 0.0
        %207 = vmatpush1.msra.mxu0 0.0
        %208 = vmatprep.subr.mxu0 0.0
        %209 = vmatpush1.msra.mxu0 0.0
        %210 = vmatprep.subr.mxu0 0.0
        %211 = vmatpush1.msra.mxu0 0.0
        %212 = vmatprep.subr.mxu0 0.0
        %213 = vmatpush1.msra.mxu0 0.0
        %214 = vmatprep.subr.mxu0 0.0
        %215 = vmatpush1.msra.mxu0 0.0
        %216 = vmatprep.subr.mxu0 0.0
        %217 = vmatpush1.msra.mxu0 0.0
        %218 = vmatprep.subr.mxu0 0.0
        %219 = vmatpush1.msra.mxu0 0.0
        %220 = vmatprep.subr.mxu0 0.0
        %221 = vmatpush1.msra.mxu0 0.0
        %222 = vmatprep.subr.mxu0 0.0
        %223 = vmatpush1.msra.mxu0 0.0
        %224 = vmatprep.subr.mxu0 0.0
        %225 = vmatpush1.msra.mxu0 0.0
        %226 = vmatprep.subr.mxu0 0.0
        %227 = vmatpush1.msra.mxu0 0.0
        %228 = vmatprep.subr.mxu0 0.0
        %229 = vmatpush1.msra.mxu0 0.0
        %230 = vmatprep.subr.mxu0 0.0
        %231 = vmatpush1.msra.mxu0 0.0
        %232 = vmatprep.subr.mxu0 0.0
        %233 = vmatpush1.msra.mxu0 0.0
        %234 = vmatprep.subr.mxu0 0.0
        %235 = vmatpush1.msra.mxu0 0.0
        %236 = vmatprep.subr.mxu0 0.0
        %237 = vmatpush1.msra.mxu0 0.0
        %238 = vmatprep.subr.mxu0 0.0
        %239 = vmatpush1.msra.mxu0 0.0
        %240 = vmatprep.subr.mxu0 0.0
        %241 = vmatpush1.msra.mxu0 0.0
        %242 = vmatprep.mubr.f32.mxu0 0.0
        %243 = vmatmul.mubr.f32.gmra.mrb[0].mxu0 %v176
        %v244 = vpop.f32.mrb[0].mxu0
        %v245 = vadd.f32 %v173, %v244
        %v246 = vpop.f32.mrb[0].mxu0
        %247 = vdwg.mxu0
        %v248 = vmax.f32 %v245, 0.0
        %v249 = vld [vmem:[%s1 + $0x10] sm:$0xff]
        %v250 = vld [vmem:[%s1 + $0x18] sm:$0xff]
        %v251 = vld [vmem:[%s1 + $0x20] sm:$0xff]
        %v252 = vld [vmem:[%s1 + $0x28] sm:$0xff]
        %v253 = vld [vmem:[%s1 + $0x88] sm:$0x1]
        %v254 = vlaneseq
        %v255 = vshrl.u32 %v254, 7
        %v256 = vsub.s32 0, %v255
        %v257 = vrot.slane %v253, %v256
        %vm258 = vcmask 261120
        %v260 = vsel %vm258, %v248, 0
        %262 = vmatprep.subr.mxu0 0.0
        %263 = vmatpush1.msra.mxu0 %v249
        %264 = vmatprep.subr.mxu0 0.0
        %265 = vmatpush1.msra.mxu0 %v250
        %266 = vmatprep.subr.mxu0 0.0
        %267 = vmatpush1.msra.mxu0 %v251
        %268 = vmatprep.subr.mxu0 0.0
        %269 = vmatpush1.msra.mxu0 %v252
        %270 = vmatprep.subr.mxu0 0.0
        %271 = vmatpush1.msra.mxu0 0.0
        %272 = vmatprep.subr.mxu0 0.0
        %273 = vmatpush1.msra.mxu0 0.0
        %274 = vmatprep.subr.mxu0 0.0
        %275 = vmatpush1.msra.mxu0 0.0
        %276 = vmatprep.subr.mxu0 0.0
        %277 = vmatpush1.msra.mxu0 0.0
        %278 = vmatprep.subr.mxu0 0.0
        %279 = vmatpush1.msra.mxu0 0.0
        %280 = vmatprep.subr.mxu0 0.0
        %281 = vmatpush1.msra.mxu0 0.0
        %282 = vmatprep.subr.mxu0 0.0
        %283 = vmatpush1.msra.mxu0 0.0
        %284 = vmatprep.subr.mxu0 0.0
        %285 = vmatpush1.msra.mxu0 0.0
        %286 = vmatprep.subr.mxu0 0.0
        %287 = vmatpush1.msra.mxu0 0.0
        %288 = vmatprep.subr.mxu0 0.0
        %289 = vmatpush1.msra.mxu0 0.0
        %290 = vmatprep.subr.mxu0 0.0
        %291 = vmatpush1.msra.mxu0 0.0
        %292 = vmatprep.subr.mxu0 0.0
        %293 = vmatpush1.msra.mxu0 0.0
        %294 = vmatprep.subr.mxu0 0.0
        %295 = vmatpush1.msra.mxu0 0.0
        %296 = vmatprep.subr.mxu0 0.0
        %297 = vmatpush1.msra.mxu0 0.0
        %298 = vmatprep.subr.mxu0 0.0
        %299 = vmatpush1.msra.mxu0 0.0
        %300 = vmatprep.subr.mxu0 0.0
        %301 = vmatpush1.msra.mxu0 0.0
        %302 = vmatprep.subr.mxu0 0.0
        %303 = vmatpush1.msra.mxu0 0.0
        %304 = vmatprep.subr.mxu0 0.0
        %305 = vmatpush1.msra.mxu0 0.0
        %306 = vmatprep.subr.mxu0 0.0
        %307 = vmatpush1.msra.mxu0 0.0
        %308 = vmatprep.subr.mxu0 0.0
        %309 = vmatpush1.msra.mxu0 0.0
        %310 = vmatprep.subr.mxu0 0.0
        %311 = vmatpush1.msra.mxu0 0.0
        %312 = vmatprep.subr.mxu0 0.0
        %313 = vmatpush1.msra.mxu0 0.0
        %314 = vmatprep.subr.mxu0 0.0
        %315 = vmatpush1.msra.mxu0 0.0
        %316 = vmatprep.subr.mxu0 0.0
        %317 = vmatpush1.msra.mxu0 0.0
        %318 = vmatprep.subr.mxu0 0.0
        %319 = vmatpush1.msra.mxu0 0.0
        %320 = vmatprep.subr.mxu0 0.0
        %321 = vmatpush1.msra.mxu0 0.0
        %322 = vmatprep.subr.mxu0 0.0
        %323 = vmatpush1.msra.mxu0 0.0
        %324 = vmatprep.subr.mxu0 0.0
        %325 = vmatpush1.msra.mxu0 0.0
        %326 = vmatprep.mubr.f32.mxu0 0.0
        %327 = vmatmul.mubr.f32.gmra.mrb[0].mxu0 %v260
        %v328 = vpop.f32.mrb[0].mxu0
        %v329 = vadd.f32 %v257, %v328
        %v330 = vpop.f32.mrb[0].mxu0
        %331 = vdwg.mxu0
        %v332 = vmax.f32 %v329, 0.0
        %334 = vrot.lane.b32.xlu0 %v332, 16
        %v335 = vpop.permute.xlu0 %334
        %v337 = vsel %vm174, %v166, %v335
        %v338 = vld [vmem:[%s1 + $0x30] sm:$0xff]
        %v339 = vld [vmem:[%s1 + $0x38] sm:$0xff]
        %v340 = vld [vmem:[%s1 + $0x40] sm:$0xff]
        %v341 = vld [vmem:[%s1 + $0x48] sm:$0xff]
        %v342 = vld [vmem:[%s1 + $0x50] sm:$0xff]
        %v343 = vld [vmem:[%s1 + $0x58] sm:$0xff]
        %v344 = vld [vmem:[%s1 + $0x90] sm:$0x1]
        %v345 = vlaneseq
        %v346 = vshrl.u32 %v345, 7
        %v347 = vsub.s32 0, %v346
        %v348 = vrot.slane %v344, %v347
        %vm349 = vcmask 392192
        %v351 = vsel %vm349, %v337, 0
        %353 = vmatprep.subr.mxu0 0.0
        %354 = vmatpush1.msra.mxu0 %v338
        %355 = vmatprep.subr.mxu0 0.0
        %356 = vmatpush1.msra.mxu0 %v339
        %357 = vmatprep.subr.mxu0 0.0
        %358 = vmatpush1.msra.mxu0 %v340
        %359 = vmatprep.subr.mxu0 0.0
        %360 = vmatpush1.msra.mxu0 %v341
        %361 = vmatprep.subr.mxu0 0.0
        %362 = vmatpush1.msra.mxu0 %v342
        %363 = vmatprep.subr.mxu0 0.0
        %364 = vmatpush1.msra.mxu0 %v343
        %365 = vmatprep.subr.mxu0 0.0
        %366 = vmatpush1.msra.mxu0 0.0
        %367 = vmatprep.subr.mxu0 0.0
        %368 = vmatpush1.msra.mxu0 0.0
        %369 = vmatprep.subr.mxu0 0.0
        %370 = vmatpush1.msra.mxu0 0.0
        %371 = vmatprep.subr.mxu0 0.0
        %372 = vmatpush1.msra.mxu0 0.0
        %373 = vmatprep.subr.mxu0 0.0
        %374 = vmatpush1.msra.mxu0 0.0
        %375 = vmatprep.subr.mxu0 0.0
        %376 = vmatpush1.msra.mxu0 0.0
        %377 = vmatprep.subr.mxu0 0.0
        %378 = vmatpush1.msra.mxu0 0.0
        %379 = vmatprep.subr.mxu0 0.0
        %380 = vmatpush1.msra.mxu0 0.0
        %381 = vmatprep.subr.mxu0 0.0
        %382 = vmatpush1.msra.mxu0 0.0
        %383 = vmatprep.subr.mxu0 0.0
        %384 = vmatpush1.msra.mxu0 0.0
        %385 = vmatprep.subr.mxu0 0.0
        %386 = vmatpush1.msra.mxu0 0.0
        %387 = vmatprep.subr.mxu0 0.0
        %388 = vmatpush1.msra.mxu0 0.0
        %389 = vmatprep.subr.mxu0 0.0
        %390 = vmatpush1.msra.mxu0 0.0
        %391 = vmatprep.subr.mxu0 0.0
        %392 = vmatpush1.msra.mxu0 0.0
        %393 = vmatprep.subr.mxu0 0.0
        %394 = vmatpush1.msra.mxu0 0.0
        %395 = vmatprep.subr.mxu0 0.0
        %396 = vmatpush1.msra.mxu0 0.0
        %397 = vmatprep.subr.mxu0 0.0
        %398 = vmatpush1.msra.mxu0 0.0
        %399 = vmatprep.subr.mxu0 0.0
        %400 = vmatpush1.msra.mxu0 0.0
        %401 = vmatprep.subr.mxu0 0.0
        %402 = vmatpush1.msra.mxu0 0.0
        %403 = vmatprep.subr.mxu0 0.0
        %404 = vmatpush1.msra.mxu0 0.0
        %405 = vmatprep.subr.mxu0 0.0
        %406 = vmatpush1.msra.mxu0 0.0
        %407 = vmatprep.subr.mxu0 0.0
        %408 = vmatpush1.msra.mxu0 0.0
        %409 = vmatprep.subr.mxu0 0.0
        %410 = vmatpush1.msra.mxu0 0.0
        %411 = vmatprep.subr.mxu0 0.0
        %412 = vmatpush1.msra.mxu0 0.0
        %413 = vmatprep.subr.mxu0 0.0
        %414 = vmatpush1.msra.mxu0 0.0
        %415 = vmatprep.subr.mxu0 0.0
        %416 = vmatpush1.msra.mxu0 0.0
        %417 = vmatprep.mubr.f32.mxu0 0.0
        %418 = vmatmul.mubr.f32.gmra.mrb[0].mxu0 %v351
        %v419 = vpop.f32.mrb[0].mxu0
        %v420 = vadd.f32 %v348, %v419
        %v421 = vpop.f32.mrb[0].mxu0
        %422 = vdwg.mxu0
        %v423 = vmax.f32 %v420, 0.0
        %v424 = vld [vmem:[%s1 + $0x60] sm:$0xff]
        %v425 = vld [vmem:[%s1 + $0x68] sm:$0xff]
        %v426 = vld [vmem:[%s1 + $0x70] sm:$0xff]
        %v427 = vld [vmem:[%s1 + $0x78] sm:$0xff]
        %v428 = vld [vmem:[%s1 + $0x98] sm:$0x1]
        %v429 = vlaneseq
        %v430 = vshrl.u32 %v429, 7
        %v431 = vsub.s32 0, %v430
        %v432 = vrot.slane %v428, %v431
        %v434 = vsel %vm258, %v423, 0
        %436 = vmatprep.subr.mxu0 0.0
        %437 = vmatpush1.msra.mxu0 %v424
        %438 = vmatprep.subr.mxu0 0.0
        %439 = vmatpush1.msra.mxu0 %v425
        %440 = vmatprep.subr.mxu0 0.0
        %441 = vmatpush1.msra.mxu0 %v426
        %442 = vmatprep.subr.mxu0 0.0
        %443 = vmatpush1.msra.mxu0 %v427
        %444 = vmatprep.subr.mxu0 0.0
        %445 = vmatpush1.msra.mxu0 0.0
        %446 = vmatprep.subr.mxu0 0.0
        %447 = vmatpush1.msra.mxu0 0.0
        %448 = vmatprep.subr.mxu0 0.0
        %449 = vmatpush1.msra.mxu0 0.0
        %450 = vmatprep.subr.mxu0 0.0
        %451 = vmatpush1.msra.mxu0 0.0
        %452 = vmatprep.subr.mxu0 0.0
        %453 = vmatpush1.msra.mxu0 0.0
        %454 = vmatprep.subr.mxu0 0.0
        %455 = vmatpush1.msra.mxu0 0.0
        %456 = vmatprep.subr.mxu0 0.0
        %457 = vmatpush1.msra.mxu0 0.0
        %458 = vmatprep.subr.mxu0 0.0
        %459 = vmatpush1.msra.mxu0 0.0
        %460 = vmatprep.subr.mxu0 0.0
        %461 = vmatpush1.msra.mxu0 0.0
        %462 = vmatprep.subr.mxu0 0.0
        %463 = vmatpush1.msra.mxu0 0.0
        %464 = vmatprep.subr.mxu0 0.0
        %465 = vmatpush1.msra.mxu0 0.0
        %466 = vmatprep.subr.mxu0 0.0
        %467 = vmatpush1.msra.mxu0 0.0
        %468 = vmatprep.subr.mxu0 0.0
        %469 = vmatpush1.msra.mxu0 0.0
        %470 = vmatprep.subr.mxu0 0.0
        %471 = vmatpush1.msra.mxu0 0.0
        %472 = vmatprep.subr.mxu0 0.0
        %473 = vmatpush1.msra.mxu0 0.0
        %474 = vmatprep.subr.mxu0 0.0
        %475 = vmatpush1.msra.mxu0 0.0
        %476 = vmatprep.subr.mxu0 0.0
        %477 = vmatpush1.msra.mxu0 0.0
        %478 = vmatprep.subr.mxu0 0.0
        %479 = vmatpush1.msra.mxu0 0.0
        %480 = vmatprep.subr.mxu0 0.0
        %481 = vmatpush1.msra.mxu0 0.0
        %482 = vmatprep.subr.mxu0 0.0
        %483 = vmatpush1.msra.mxu0 0.0
        %484 = vmatprep.subr.mxu0 0.0
        %485 = vmatpush1.msra.mxu0 0.0
        %486 = vmatprep.subr.mxu0 0.0
        %487 = vmatpush1.msra.mxu0 0.0
        %488 = vmatprep.subr.mxu0 0.0
        %489 = vmatpush1.msra.mxu0 0.0
        %490 = vmatprep.subr.mxu0 0.0
        %491 = vmatpush1.msra.mxu0 0.0
        %492 = vmatprep.subr.mxu0 0.0
        %493 = vmatpush1.msra.mxu0 0.0
        %494 = vmatprep.subr.mxu0 0.0
        %495 = vmatpush1.msra.mxu0 0.0
        %496 = vmatprep.subr.mxu0 0.0
        %497 = vmatpush1.msra.mxu0 0.0
        %498 = vmatprep.subr.mxu0 0.0
        %499 = vmatpush1.msra.mxu0 0.0
        %500 = vmatprep.mubr.f32.mxu0 0.0
        %501 = vmatmul.mubr.f32.gmra.mrb[0].mxu0 %v434
        %v502 = vpop.f32.mrb[0].mxu0
        %v503 = vadd.f32 %v432, %v502
        %v504 = vpop.f32.mrb[0].mxu0
        %505 = vdwg.mxu0
        %v506 = vmax.f32 %v503, 0.0
        %508 = vrot.lane.b32.xlu0 %v506, 32
        %v509 = vpop.permute.xlu0 %508
        %v511 = vsel %vm258, %v332, %v509
        %v512 = vld [vmem:[%s2] sm:$0xff]
        %v513 = vld [vmem:[%s2 + $0x8] sm:$0xff]
        %v514 = vld [vmem:[%s2 + $0x10] sm:$0xff]
        %v515 = vld [vmem:[%s2 + $0x18] sm:$0xff]
        %v516 = vld [vmem:[%s2 + $0x20] sm:$0xff]
        %v517 = vld [vmem:[%s2 + $0x28] sm:$0xff]
        %v518 = vld [vmem:[%s2 + $0x30] sm:$0xff]
        %v519 = vld [vmem:[%s2 + $0x38] sm:$0xff]
        %v520 = vld [vmem:[%s2 + $0x40] sm:$0x1]
        %v521 = vlaneseq
        %v522 = vshrl.u32 %v521, 7
        %v523 = vsub.s32 0, %v522
        %v524 = vrot.slane %v520, %v523
        %vm525 = vcmask 523264
        %v527 = vsel %vm525, %v511, 0
        %529 = vmatprep.subr.mxu0 0.0
        %530 = vmatpush1.msra.mxu0 %v512
        %531 = vmatprep.subr.mxu0 0.0
        %532 = vmatpush1.msra.mxu0 %v513
        %533 = vmatprep.subr.mxu0 0.0
        %534 = vmatpush1.msra.mxu0 %v514
        %535 = vmatprep.subr.mxu0 0.0
        %536 = vmatpush1.msra.mxu0 %v515
        %537 = vmatprep.subr.mxu0 0.0
        %538 = vmatpush1.msra.mxu0 %v516
        %539 = vmatprep.subr.mxu0 0.0
        %540 = vmatpush1.msra.mxu0 %v517
        %541 = vmatprep.subr.mxu0 0.0
        %542 = vmatpush1.msra.mxu0 %v518
        %543 = vmatprep.subr.mxu0 0.0
        %544 = vmatpush1.msra.mxu0 %v519
        %545 = vmatprep.subr.mxu0 0.0
        %546 = vmatpush1.msra.mxu0 0.0
        %547 = vmatprep.subr.mxu0 0.0
        %548 = vmatpush1.msra.mxu0 0.0
        %549 = vmatprep.subr.mxu0 0.0
        %550 = vmatpush1.msra.mxu0 0.0
        %551 = vmatprep.subr.mxu0 0.0
        %552 = vmatpush1.msra.mxu0 0.0
        %553 = vmatprep.subr.mxu0 0.0
        %554 = vmatpush1.msra.mxu0 0.0
        %555 = vmatprep.subr.mxu0 0.0
        %556 = vmatpush1.msra.mxu0 0.0
        %557 = vmatprep.subr.mxu0 0.0
        %558 = vmatpush1.msra.mxu0 0.0
        %559 = vmatprep.subr.mxu0 0.0
        %560 = vmatpush1.msra.mxu0 0.0
        %561 = vmatprep.subr.mxu0 0.0
        %562 = vmatpush1.msra.mxu0 0.0
        %563 = vmatprep.subr.mxu0 0.0
        %564 = vmatpush1.msra.mxu0 0.0
        %565 = vmatprep.subr.mxu0 0.0
        %566 = vmatpush1.msra.mxu0 0.0
        %567 = vmatprep.subr.mxu0 0.0
        %568 = vmatpush1.msra.mxu0 0.0
        %569 = vmatprep.subr.mxu0 0.0
        %570 = vmatpush1.msra.mxu0 0.0
        %571 = vmatprep.subr.mxu0 0.0
        %572 = vmatpush1.msra.mxu0 0.0
        %573 = vmatprep.subr.mxu0 0.0
        %574 = vmatpush1.msra.mxu0 0.0
        %575 = vmatprep.subr.mxu0 0.0
        %576 = vmatpush1.msra.mxu0 0.0
        %577 = vmatprep.subr.mxu0 0.0
        %578 = vmatpush1.msra.mxu0 0.0
        %579 = vmatprep.subr.mxu0 0.0
        %580 = vmatpush1.msra.mxu0 0.0
        %581 = vmatprep.subr.mxu0 0.0
        %582 = vmatpush1.msra.mxu0 0.0
        %583 = vmatprep.subr.mxu0 0.0
        %584 = vmatpush1.msra.mxu0 0.0
        %585 = vmatprep.subr.mxu0 0.0
        %586 = vmatpush1.msra.mxu0 0.0
        %587 = vmatprep.subr.mxu0 0.0
        %588 = vmatpush1.msra.mxu0 0.0
        %589 = vmatprep.subr.mxu0 0.0
        %590 = vmatpush1.msra.mxu0 0.0
        %591 = vmatprep.subr.mxu0 0.0
        %592 = vmatpush1.msra.mxu0 0.0
        %593 = vmatprep.mubr.f32.mxu0 0.0
        %594 = vmatmul.mubr.f32.gmra.mrb[0].mxu0 %v527
        %v595 = vpop.f32.mrb[0].mxu0
        %v596 = vadd.f32 %v524, %v595
        %v597 = vpop.f32.mrb[0].mxu0
        %598 = vdwg.mxu0
        %599 = vst [vmem:[%s161] sm:$0xff] %v596
        %s600 = sand.u32 %s93, 1
        %s601 = scalar_lea.sflag [#allocation3], %s600
        %s602 = sand.u32 %s93, 1
        %s603 = smul.addr %s602, 8
        %s604 = scalar_lea.vmem [#allocation2], %s603
        // Predicated region
        $region33: #{tpu_custom_call.1} parent=31 // pred_check
          %p605 = pneg %p103
        $region34: #{tpu_custom_call.1} parent=31 // pred_check_branch
          %607 = sbr.rel (%p605) target = $region36
        $region35: #{tpu_custom_call.1} parent=31 // pred_region
          %s609 = ssub.s32 128, 128
          %610 = vsyncadd %s601, %s609
          %s611 = smul.addr %s17, 128
          %s612 = scalar_lea.hbm %s3, %s611
          %s614 = sshll.u32 %s604, 4
          %s615 = int_to_ptr.vmem [resolvable:$true] %s614
          %617 = dma.vmem_to_hbm [thread:$0]  %s615, 128, %s612, %s601
        $region36: #{tpu_custom_call.1} parent=31 // pred_fallthru
          _
      $region32: #{tpu_custom_call.1} parent=5 // pred_fallthru
        _
      %p618 = scmp.le.s32.totalorder 2, %s12
      // Predicated region
      $region37: #{tpu_custom_call.1} parent=5 // pred_check
        %p619 = pneg %p618
      $region38: #{tpu_custom_call.1} parent=5 // pred_check_branch
        %621 = sbr.rel (%p619) target = $region40
      $region39: #{tpu_custom_call.1} parent=5 // pred_region
        %s622 = ssub.s32 %s12, 2
        // Predicated region
        $region41: #{tpu_custom_call.1} parent=39 // pred_check
          %p623 = pneg %p109
        $region42: #{tpu_custom_call.1} parent=39 // pred_check_branch
          %625 = sbr.rel (%p623) target = $region44
        $region43: #{tpu_custom_call.1} parent=39 // pred_region
          %s626 = sand.u32 %s94, 1
          %s627 = scalar_lea.sflag [#allocation3], %s626
          %s628 = sand.u32 %s94, 1
          %s629 = smul.addr %s628, 8
          %s630 = scalar_lea.vmem [#allocation2], %s629
          %631 = dma.done %s627, 128
        $region44: #{tpu_custom_call.1} parent=39 // pred_fallthru
          _
      $region40: #{tpu_custom_call.1} parent=5 // pred_fallthru
        _
    $region6: #{tpu_custom_call.1} parent=1 // loop_footer
      %s16 = sadd.s32 1, %s12
    $region7: #{tpu_custom_call.1} parent=1 // loop_footer_branch
      %11 = sbr.rel target = $region3
    $region8: #{tpu_custom_call.1} parent=1 // loop_exit
      _
    %632 = vsyncpa [#allocation3], 1
    %s633 = scalar_lea.sflag [#allocation3], 1
    %634 = vsyncpa %s633, 1

</llo_original>
